<compile_context>
chip_gen: v7x
topology: tpu7x:2x2x1
jax: 0.10.0
libtpu: 0.0.40
codegen_flags: <defaults>
</compile_context>

<pallas_src>
import functools

import jax
import jax.numpy as jnp
import numpy as np
from jax.experimental import pallas as pl
from jax.experimental.pallas import tpu as pltpu

HIDDEN = 32
KSIZE = 3
PAD = (KSIZE - 1) // 2


# --------------------------- fused RCNN kernel ------------------------------
def _rcnn_fused_kernel(x_ref, wih_t_ref, whh_t_ref, b_ref, wcat_ref, out_ref,
                       *, seq_len, batch, hidden, ksize, pad):
    # seq_len = L (RNN time steps / conv "batch"), batch = N (RNN batch / conv length),
    # hidden = H (RNN hidden / conv channels).
    L, N, H, K = seq_len, batch, hidden, ksize

    x = x_ref[...].astype(jnp.float32)                        # (L*N, H)

    # ---- RNN ----
    # Input projection for all timesteps in one matmul.
    xw = (jnp.dot(x, wih_t_ref[...], preferred_element_type=jnp.float32)
          + b_ref[...])                                       # (L*N, H)
    whh_t = whh_t_ref[...]                                    # (H, H)

    h = jnp.zeros((N, H), jnp.float32)
    h_seq = []
    for t in range(L):                                        # static unroll (L is tiny)
        h = jnp.tanh(xw[t * N:(t + 1) * N, :]
                     + jnp.dot(h, whh_t, preferred_element_type=jnp.float32))
        h_seq.append(h)

    # ---- GatedCNN ----
    # Same-padded Conv1d along N for each of the L "batch" elements, expressed as a
    # single im2col matmul against the concatenated (conv | gate) weights.
    zrow = jnp.zeros((pad, H), jnp.float32)
    rows = []
    for t in range(L):
        xp = jnp.concatenate([zrow, h_seq[t], zrow], axis=0)  # (N + 2*pad, H), in-kernel zero pad
        rows.append(jnp.concatenate([xp[k:k + N, :] for k in range(K)], axis=1))  # (N, K*H)
    im2col = jnp.concatenate(rows, axis=0)                    # (L*N, K*H)

    ab = jnp.dot(im2col, wcat_ref[...], preferred_element_type=jnp.float32)  # (L*N, 2*H)
    a = ab[:, :H]
    g = ab[:, H:]
    out_ref[...] = (a * jax.nn.sigmoid(g)).astype(out_ref.dtype)


def rcnn_forward(x, params):
    w_ih, w_hh, b_ih, b_hh, w_cnn, w_gate = params
    L, N, H = x.shape
    K = w_cnn.shape[-1]
    pad = (K - 1) // 2

    x2d = x.reshape(L * N, H)                                 # contiguous reshape, free
    wih_t = w_ih.T                                            # (H_in, H_out)
    whh_t = w_hh.T
    b = (b_ih + b_hh).reshape(1, H)
    # Conv1d weight (H_out, H_in, K) -> im2col weight (K*H_in, H_out); row k*H+i
    # multiplies im2col column k*H+i = xp[s+k, i].  Concatenate conv & gate -> (K*H, 2H).
    wa = jnp.transpose(w_cnn, (2, 1, 0)).reshape(K * H, H)
    wb = jnp.transpose(w_gate, (2, 1, 0)).reshape(K * H, H)
    wcat = jnp.concatenate([wa, wb], axis=1)                  # (K*H, 2*H) = (96, 64)

    kern = functools.partial(_rcnn_fused_kernel,
                             seq_len=L, batch=N, hidden=H, ksize=K, pad=pad)
    vmem = pl.BlockSpec(memory_space=pltpu.MemorySpace.VMEM)
    out2d = pl.pallas_call(
        kern,
        out_shape=jax.ShapeDtypeStruct((L * N, H), jnp.float32),
        in_specs=[vmem, vmem, vmem, vmem, vmem],
        out_specs=vmem,
    )(x2d, wih_t, whh_t, b, wcat)
    return out2d.reshape(L, N, H)


# ----------------------------- pure-JAX reference ---------------------------
def rcnn_reference(x, params):
    w_ih, w_hh, b_ih, b_hh, w_cnn, w_gate = params
    L, N, H = x.shape

    def step(h, x_t):
        h = jnp.tanh(x_t @ w_ih.T + b_ih + h @ w_hh.T + b_hh)
        return h, h

    _, out = jax.lax.scan(step, jnp.zeros((N, H), jnp.float32), x)

    def conv_same(x3, w):
        xp = jnp.pad(x3, ((0, 0), (PAD, PAD), (0, 0)))
        acc = jnp.zeros_like(x3)
        for k in range(KSIZE):
            acc = acc + jnp.einsum('bji,oi->bjo', xp[:, k:k + x3.shape[1], :], w[:, :, k])
        return acc

    a = conv_same(out, w_cnn)
    b = conv_same(out, w_gate)
    return a * jax.nn.sigmoid(b)


if __name__ == "__main__":
    key = jax.random.PRNGKey(0)
    ks = jax.random.split(key, 7)
    bound = 1.0 / np.sqrt(HIDDEN)

    w_ih = jax.random.uniform(ks[0], (HIDDEN, HIDDEN), jnp.float32, -bound, bound)
    w_hh = jax.random.uniform(ks[1], (HIDDEN, HIDDEN), jnp.float32, -bound, bound)
    b_ih = jax.random.uniform(ks[2], (HIDDEN,), jnp.float32, -bound, bound)
    b_hh = jax.random.uniform(ks[3], (HIDDEN,), jnp.float32, -bound, bound)
    w_cnn = jax.random.uniform(ks[4], (HIDDEN, HIDDEN, KSIZE), jnp.float32, -bound, bound)
    w_gate = jax.random.uniform(ks[5], (HIDDEN, HIDDEN, KSIZE), jnp.float32, -bound, bound)
    params = (w_ih, w_hh, b_ih, b_hh, w_cnn, w_gate)

    # (L=2, N=8, H=32): the pipeline's (batch, seq, hidden) tensor fed seq-first into nn.RNN.
    x = jax.random.normal(ks[6], (2, 8, HIDDEN), jnp.float32)

    out = jax.block_until_ready(rcnn_forward(x, params))
    ref = jax.block_until_ready(rcnn_reference(x, params))
    np.testing.assert_allclose(np.asarray(out), np.asarray(ref), rtol=2e-2, atol=2e-2)

    print("KERNEL_OK")
</pallas_src>

<mosaic_0001>
module attributes {stable_mosaic.version = 11 : i64} {
  func.func @_rcnn_fused_kernel(%arg0: memref<16x32xf32, #tpu.memory_space<vmem>>, %arg1: memref<32x32xf32, #tpu.memory_space<vmem>>, %arg2: memref<32x32xf32, #tpu.memory_space<vmem>>, %arg3: memref<1x32xf32, #tpu.memory_space<vmem>>, %arg4: memref<96x64xf32, #tpu.memory_space<vmem>>, %arg5: memref<16x32xf32, #tpu.memory_space<vmem>>) attributes {dimension_semantics = [], scalar_prefetch = 0 : i64, scratch_operands = 0 : i64, tpu.core_type = #tpu.core_type<tc>} {
    %c0 = arith.constant 0 : index
    %c0_0 = arith.constant 0 : index
    %0 = vector.load %arg0[%c0, %c0_0] : memref<16x32xf32, #tpu.memory_space<vmem>>, vector<16x32xf32>
    %c0_1 = arith.constant 0 : index
    %c0_2 = arith.constant 0 : index
    %1 = vector.load %arg1[%c0_1, %c0_2] : memref<32x32xf32, #tpu.memory_space<vmem>>, vector<32x32xf32>
    %cst = arith.constant dense<0.000000e+00> : vector<16x32xf32>
    %2 = tpu.matmul %0, %1, %cst {dimension_numbers = #tpu.dot_dimension_numbers<[1], [0], [0], [1], [0, 0, 1, 1], [], []>} : vector<16x32xf32>, vector<32x32xf32>, vector<16x32xf32> -> vector<16x32xf32>
    %c0_3 = arith.constant 0 : index
    %c0_4 = arith.constant 0 : index
    %3 = vector.load %arg3[%c0_3, %c0_4] : memref<1x32xf32, #tpu.memory_space<vmem>>, vector<1x32xf32>
    %4 = vector.broadcast %3 : vector<1x32xf32> to vector<16x32xf32>
    %5 = arith.addf %2, %4 : vector<16x32xf32>
    %c0_5 = arith.constant 0 : index
    %c0_6 = arith.constant 0 : index
    %6 = vector.load %arg2[%c0_5, %c0_6] : memref<32x32xf32, #tpu.memory_space<vmem>>, vector<32x32xf32>
    %cst_7 = arith.constant 0.000000e+00 : f32
    %7 = vector.broadcast %cst_7 : f32 to vector<8x32xf32>
    %8 = vector.extract_strided_slice %5 {offsets = [0, 0], sizes = [8, 32], strides = [1, 1]} : vector<16x32xf32> to vector<8x32xf32>
    %cst_8 = arith.constant dense<0.000000e+00> : vector<8x32xf32>
    %9 = tpu.matmul %7, %6, %cst_8 {dimension_numbers = #tpu.dot_dimension_numbers<[1], [0], [0], [1], [0, 0, 1, 1], [], []>} : vector<8x32xf32>, vector<32x32xf32>, vector<8x32xf32> -> vector<8x32xf32>
    %10 = arith.addf %8, %9 : vector<8x32xf32>
    %11 = math.tanh %10 : vector<8x32xf32>
    %12 = vector.extract_strided_slice %5 {offsets = [8, 0], sizes = [8, 32], strides = [1, 1]} : vector<16x32xf32> to vector<8x32xf32>
    %cst_9 = arith.constant dense<0.000000e+00> : vector<8x32xf32>
    %13 = tpu.matmul %11, %6, %cst_9 {dimension_numbers = #tpu.dot_dimension_numbers<[1], [0], [0], [1], [0, 0, 1, 1], [], []>} : vector<8x32xf32>, vector<32x32xf32>, vector<8x32xf32> -> vector<8x32xf32>
    %14 = arith.addf %12, %13 : vector<8x32xf32>
    %15 = math.tanh %14 : vector<8x32xf32>
    %cst_10 = arith.constant 0.000000e+00 : f32
    %16 = vector.broadcast %cst_10 : f32 to vector<1x32xf32>
    %17 = tpu.concatenate %16, %11, %16 in 0 : vector<1x32xf32>, vector<8x32xf32>, vector<1x32xf32> -> vector<10x32xf32>
    %18 = vector.extract_strided_slice %17 {offsets = [0, 0], sizes = [8, 32], strides = [1, 1]} : vector<10x32xf32> to vector<8x32xf32>
    %19 = vector.extract_strided_slice %17 {offsets = [1, 0], sizes = [8, 32], strides = [1, 1]} : vector<10x32xf32> to vector<8x32xf32>
    %20 = vector.extract_strided_slice %17 {offsets = [2, 0], sizes = [8, 32], strides = [1, 1]} : vector<10x32xf32> to vector<8x32xf32>
    %21 = tpu.concatenate %18, %19, %20 in 1 : vector<8x32xf32>, vector<8x32xf32>, vector<8x32xf32> -> vector<8x96xf32>
    %22 = tpu.concatenate %16, %15, %16 in 0 : vector<1x32xf32>, vector<8x32xf32>, vector<1x32xf32> -> vector<10x32xf32>
    %23 = vector.extract_strided_slice %22 {offsets = [0, 0], sizes = [8, 32], strides = [1, 1]} : vector<10x32xf32> to vector<8x32xf32>
    %24 = vector.extract_strided_slice %22 {offsets = [1, 0], sizes = [8, 32], strides = [1, 1]} : vector<10x32xf32> to vector<8x32xf32>
    %25 = vector.extract_strided_slice %22 {offsets = [2, 0], sizes = [8, 32], strides = [1, 1]} : vector<10x32xf32> to vector<8x32xf32>
    %26 = tpu.concatenate %23, %24, %25 in 1 : vector<8x32xf32>, vector<8x32xf32>, vector<8x32xf32> -> vector<8x96xf32>
    %27 = tpu.concatenate %21, %26 in 0 : vector<8x96xf32>, vector<8x96xf32> -> vector<16x96xf32>
    %c0_11 = arith.constant 0 : index
    %c0_12 = arith.constant 0 : index
    %28 = vector.load %arg4[%c0_11, %c0_12] : memref<96x64xf32, #tpu.memory_space<vmem>>, vector<96x64xf32>
    %cst_13 = arith.constant dense<0.000000e+00> : vector<16x64xf32>
    %29 = tpu.matmul %27, %28, %cst_13 {dimension_numbers = #tpu.dot_dimension_numbers<[1], [0], [0], [1], [0, 0, 1, 1], [], []>} : vector<16x96xf32>, vector<96x64xf32>, vector<16x64xf32> -> vector<16x64xf32>
    %30 = vector.extract_strided_slice %29 {offsets = [0, 0], sizes = [16, 32], strides = [1, 1]} : vector<16x64xf32> to vector<16x32xf32>
    %31 = vector.extract_strided_slice %29 {offsets = [0, 32], sizes = [16, 32], strides = [1, 1]} : vector<16x64xf32> to vector<16x32xf32>
    %32 = arith.negf %31 : vector<16x32xf32>
    %33 = math.exp %32 : vector<16x32xf32>
    %cst_14 = arith.constant 1.000000e+00 : f32
    %34 = vector.broadcast %cst_14 : f32 to vector<16x32xf32>
    %35 = arith.addf %34, %33 : vector<16x32xf32>
    %36 = arith.divf %34, %35 : vector<16x32xf32>
    %37 = arith.mulf %30, %36 : vector<16x32xf32>
    %c0_15 = arith.constant 0 : index
    %c0_16 = arith.constant 0 : index
    %38 = vector.load %arg5[%c0_15, %c0_16] : memref<16x32xf32, #tpu.memory_space<vmem>>, vector<16x32xf32>
    tpu.vector_store %arg5[%c0_15, %c0_16], %37 {strides = array<i32>} : memref<16x32xf32, #tpu.memory_space<vmem>>, vector<16x32xf32>,
    return
  }
}

</mosaic_0001>

<llo_original>
// kernel: tpu_custom_call.1
$region0: #{tpu_custom_call.1}
  #allocation0 [shape = 'u32[]', space=smem, size = 0x4, offset = 0x4, fixed_abs, tag = 'smem constant byte address 0x4 - core index']
  #allocation1 [shape = 'u32[144,128]{1,0:T(1,128)}', space=vmem, size = 0x12000, scoped, tag = 'internal scratch']
  %s0 = inlined_call_operand.vmem [shape: f32[16,32], index: 0, kind: input, shape index: {}]
  %s1 = inlined_call_operand.vmem [shape: f32[32,32], index: 1, kind: input, shape index: {}]
  %s2 = inlined_call_operand.vmem [shape: f32[32,32], index: 2, kind: input, shape index: {}]
  %s3 = inlined_call_operand.vmem [shape: f32[1,32], index: 3, kind: input, shape index: {}]
  %s4 = inlined_call_operand.vmem [shape: f32[96,64], index: 4, kind: input, shape index: {}]
  %s5 = inlined_call_operand.hbm [shape: f32[16,32], index: 5, kind: output, shape index: {}]
  %s6 = sld [smem:[#allocation0]]
  $region30: #{tpu_custom_call.1} parent=0
    _
  %s8 = ssub.s32 1, %s6
  %s9 = scalar_select 0, %s8, %s6
  $region1: #{tpu_custom_call.1} parent=0
    #allocation2 [shape = 'u8[8192]{0}', space=vmem, size = 0x2000, scoped, tag = 'output window, operand 0, single buffered']
    #allocation3 [shape = 's32[1]{0}', space=sflag, size = 0x4, scoped, tag = 'scoped memory for tpu_custom_call.1']
    %10 = vsyncpa [#allocation3], 0
    // Predicated region
    $region2: #{tpu_custom_call.1} parent=1 // pred_check
      _
    $region3: #{tpu_custom_call.1} parent=1 // pred_check_branch
      %12 = sbr.rel (0) target = $region5
    $region4: #{tpu_custom_call.1} parent=1 // pred_region
      _
    $region5: #{tpu_custom_call.1} parent=1 // pred_fallthru
      _
    // Predicated region
    $region6: #{tpu_custom_call.1} parent=1 // pred_check
      _
    $region7: #{tpu_custom_call.1} parent=1 // pred_check_branch
      %14 = sbr.rel (0) target = $region9
    $region8: #{tpu_custom_call.1} parent=1 // pred_region
      _
    $region9: #{tpu_custom_call.1} parent=1 // pred_fallthru
      _
    // Predicated region
    $region10: #{tpu_custom_call.1} parent=1 // pred_check
      _
    $region11: #{tpu_custom_call.1} parent=1 // pred_check_branch
      %16 = sbr.rel (0) target = $region13
    $region12: #{tpu_custom_call.1} parent=1 // pred_region
      _
    $region13: #{tpu_custom_call.1} parent=1 // pred_fallthru
      _
    // Predicated region
    $region14: #{tpu_custom_call.1} parent=1 // pred_check
      _
    $region15: #{tpu_custom_call.1} parent=1 // pred_check_branch
      %18 = sbr.rel (0) target = $region17
    $region16: #{tpu_custom_call.1} parent=1 // pred_region
      _
    $region17: #{tpu_custom_call.1} parent=1 // pred_fallthru
      _
    // Predicated region
    $region18: #{tpu_custom_call.1} parent=1 // pred_check
      _
    $region19: #{tpu_custom_call.1} parent=1 // pred_check_branch
      %20 = sbr.rel (0) target = $region21
    $region20: #{tpu_custom_call.1} parent=1 // pred_region
      _
    $region21: #{tpu_custom_call.1} parent=1 // pred_fallthru
      _
    %v21 = vld [vmem:[%s0] sm:$0xff]
    %v22 = vld [vmem:[%s0 + $0x8] sm:$0xff]
    %v23 = vld [vmem:[%s1] sm:$0xff]
    %v24 = vld [vmem:[%s1 + $0x8] sm:$0xff]
    %v25 = vld [vmem:[%s1 + $0x10] sm:$0xff]
    %v26 = vld [vmem:[%s1 + $0x18] sm:$0xff]
    %v27 = vld [vmem:[%s3] sm:$0x1]
    %v29 = vlaneseq
    %v30 = vshrl.u32 %v29, 7
    %v31 = vsub.s32 0, %v30
    %v32 = vrot.slane %v27, %v31
    %vm34 = vcmask 261120
    %v36 = vsel %vm34, %v21, 0
    %v39 = vsel %vm34, %v22, 0
    %41 = vmatprep.subr.mxu0 0.0
    %42 = vmatpush1.msra.mxu0 %v23
    %43 = vmatprep.subr.mxu0 0.0
    %44 = vmatpush1.msra.mxu0 %v24
    %45 = vmatprep.subr.mxu0 0.0
    %46 = vmatpush1.msra.mxu0 %v25
    %47 = vmatprep.subr.mxu0 0.0
    %48 = vmatpush1.msra.mxu0 %v26
    %49 = vmatprep.subr.mxu0 0.0
    %50 = vmatpush1.msra.mxu0 0.0
    %51 = vmatprep.subr.mxu0 0.0
    %52 = vmatpush1.msra.mxu0 0.0
    %53 = vmatprep.subr.mxu0 0.0
    %54 = vmatpush1.msra.mxu0 0.0
    %55 = vmatprep.subr.mxu0 0.0
    %56 = vmatpush1.msra.mxu0 0.0
    %57 = vmatprep.subr.mxu0 0.0
    %58 = vmatpush1.msra.mxu0 0.0
    %59 = vmatprep.subr.mxu0 0.0
    %60 = vmatpush1.msra.mxu0 0.0
    %61 = vmatprep.subr.mxu0 0.0
    %62 = vmatpush1.msra.mxu0 0.0
    %63 = vmatprep.subr.mxu0 0.0
    %64 = vmatpush1.msra.mxu0 0.0
    %65 = vmatprep.subr.mxu0 0.0
    %66 = vmatpush1.msra.mxu0 0.0
    %67 = vmatprep.subr.mxu0 0.0
    %68 = vmatpush1.msra.mxu0 0.0
    %69 = vmatprep.subr.mxu0 0.0
    %70 = vmatpush1.msra.mxu0 0.0
    %71 = vmatprep.subr.mxu0 0.0
    %72 = vmatpush1.msra.mxu0 0.0
    %73 = vmatprep.subr.mxu0 0.0
    %74 = vmatpush1.msra.mxu0 0.0
    %75 = vmatprep.subr.mxu0 0.0
    %76 = vmatpush1.msra.mxu0 0.0
    %77 = vmatprep.subr.mxu0 0.0
    %78 = vmatpush1.msra.mxu0 0.0
    %79 = vmatprep.subr.mxu0 0.0
    %80 = vmatpush1.msra.mxu0 0.0
    %81 = vmatprep.subr.mxu0 0.0
    %82 = vmatpush1.msra.mxu0 0.0
    %83 = vmatprep.subr.mxu0 0.0
    %84 = vmatpush1.msra.mxu0 0.0
    %85 = vmatprep.subr.mxu0 0.0
    %86 = vmatpush1.msra.mxu0 0.0
    %87 = vmatprep.subr.mxu0 0.0
    %88 = vmatpush1.msra.mxu0 0.0
    %89 = vmatprep.subr.mxu0 0.0
    %90 = vmatpush1.msra.mxu0 0.0
    %91 = vmatprep.subr.mxu0 0.0
    %92 = vmatpush1.msra.mxu0 0.0
    %93 = vmatprep.subr.mxu0 0.0
    %94 = vmatpush1.msra.mxu0 0.0
    %95 = vmatprep.subr.mxu0 0.0
    %96 = vmatpush1.msra.mxu0 0.0
    %97 = vmatprep.subr.mxu0 0.0
    %98 = vmatpush1.msra.mxu0 0.0
    %99 = vmatprep.subr.mxu0 0.0
    %100 = vmatpush1.msra.mxu0 0.0
    %101 = vmatprep.subr.mxu0 0.0
    %102 = vmatpush1.msra.mxu0 0.0
    %103 = vmatprep.subr.mxu0 0.0
    %104 = vmatpush1.msra.mxu0 0.0
    %105 = vmatprep.mubr.f32.mxu0 0.0
    %106 = vmatmul.mubr.f32.gmra.mrb[0].mxu0 %v36
    %v107 = vpop.f32.mrb[0].mxu0
    %v108 = vadd.f32 %v32, %v107
    %v109 = vpop.f32.mrb[0].mxu0
    %110 = vmatprep.mubr.f32.mxu0 0.0
    %111 = vmatmul.mubr.f32.gmra.mrb[0].mxu0 %v39
    %v112 = vpop.f32.mrb[0].mxu0
    %v113 = vadd.f32 %v32, %v112
    %v114 = vpop.f32.mrb[0].mxu0
    %115 = vdwg.mxu0
    %v116 = vld [vmem:[%s2] sm:$0xff]
    %v117 = vld [vmem:[%s2 + $0x8] sm:$0xff]
    %v118 = vld [vmem:[%s2 + $0x10] sm:$0xff]
    %v119 = vld [vmem:[%s2 + $0x18] sm:$0xff]
    %v121 = vsel %vm34, 0.0, 0
    %123 = vmatprep.subr.mxu0 0.0
    %124 = vmatpush1.msra.mxu0 %v116
    %125 = vmatprep.subr.mxu0 0.0
    %126 = vmatpush1.msra.mxu0 %v117
    %127 = vmatprep.subr.mxu0 0.0
    %128 = vmatpush1.msra.mxu0 %v118
    %129 = vmatprep.subr.mxu0 0.0
    %130 = vmatpush1.msra.mxu0 %v119
    %131 = vmatprep.subr.mxu0 0.0
    %132 = vmatpush1.msra.mxu0 0.0
    %133 = vmatprep.subr.mxu0 0.0
    %134 = vmatpush1.msra.mxu0 0.0
    %135 = vmatprep.subr.mxu0 0.0
    %136 = vmatpush1.msra.mxu0 0.0
    %137 = vmatprep.subr.mxu0 0.0
    %138 = vmatpush1.msra.mxu0 0.0
    %139 = vmatprep.subr.mxu0 0.0
    %140 = vmatpush1.msra.mxu0 0.0
    %141 = vmatprep.subr.mxu0 0.0
    %142 = vmatpush1.msra.mxu0 0.0
    %143 = vmatprep.subr.mxu0 0.0
    %144 = vmatpush1.msra.mxu0 0.0
    %145 = vmatprep.subr.mxu0 0.0
    %146 = vmatpush1.msra.mxu0 0.0
    %147 = vmatprep.subr.mxu0 0.0
    %148 = vmatpush1.msra.mxu0 0.0
    %149 = vmatprep.subr.mxu0 0.0
    %150 = vmatpush1.msra.mxu0 0.0
    %151 = vmatprep.subr.mxu0 0.0
    %152 = vmatpush1.msra.mxu0 0.0
    %153 = vmatprep.subr.mxu0 0.0
    %154 = vmatpush1.msra.mxu0 0.0
    %155 = vmatprep.subr.mxu0 0.0
    %156 = vmatpush1.msra.mxu0 0.0
    %157 = vmatprep.subr.mxu0 0.0
    %158 = vmatpush1.msra.mxu0 0.0
    %159 = vmatprep.subr.mxu0 0.0
    %160 = vmatpush1.msra.mxu0 0.0
    %161 = vmatprep.subr.mxu0 0.0
    %162 = vmatpush1.msra.mxu0 0.0
    %163 = vmatprep.subr.mxu0 0.0
    %164 = vmatpush1.msra.mxu0 0.0
    %165 = vmatprep.subr.mxu0 0.0
    %166 = vmatpush1.msra.mxu0 0.0
    %167 = vmatprep.subr.mxu0 0.0
    %168 = vmatpush1.msra.mxu0 0.0
    %169 = vmatprep.subr.mxu0 0.0
    %170 = vmatpush1.msra.mxu0 0.0
    %171 = vmatprep.subr.mxu0 0.0
    %172 = vmatpush1.msra.mxu0 0.0
    %173 = vmatprep.subr.mxu0 0.0
    %174 = vmatpush1.msra.mxu0 0.0
    %175 = vmatprep.subr.mxu0 0.0
    %176 = vmatpush1.msra.mxu0 0.0
    %177 = vmatprep.subr.mxu0 0.0
    %178 = vmatpush1.msra.mxu0 0.0
    %179 = vmatprep.subr.mxu0 0.0
    %180 = vmatpush1.msra.mxu0 0.0
    %181 = vmatprep.subr.mxu0 0.0
    %182 = vmatpush1.msra.mxu0 0.0
    %183 = vmatprep.subr.mxu0 0.0
    %184 = vmatpush1.msra.mxu0 0.0
    %185 = vmatprep.subr.mxu0 0.0
    %186 = vmatpush1.msra.mxu0 0.0
    %187 = vmatprep.mubr.f32.mxu0 0.0
    %188 = vmatmul.mubr.f32.gmra.mrb[0].mxu0 %v121
    %v189 = vpop.f32.mrb[0].mxu0
    %v190 = vadd.f32 0.0, %v189
    %v191 = vpop.f32.mrb[0].mxu0
    %192 = vdwg.mxu0
    %v193 = vadd.f32 %v108, %v190
    %v194 = vtanh.pop %v193
    %v196 = vsel %vm34, %v194, 0
    %198 = vmatprep.subr.mxu0 0.0
    %199 = vmatpush1.msra.mxu0 %v116
    %200 = vmatprep.subr.mxu0 0.0
    %201 = vmatpush1.msra.mxu0 %v117
    %202 = vmatprep.subr.mxu0 0.0
    %203 = vmatpush1.msra.mxu0 %v118
    %204 = vmatprep.subr.mxu0 0.0
    %205 = vmatpush1.msra.mxu0 %v119
    %206 = vmatprep.subr.mxu0 0.0
    %207 = vmatpush1.msra.mxu0 0.0
    %208 = vmatprep.subr.mxu0 0.0
    %209 = vmatpush1.msra.mxu0 0.0
    %210 = vmatprep.subr.mxu0 0.0
    %211 = vmatpush1.msra.mxu0 0.0
    %212 = vmatprep.subr.mxu0 0.0
    %213 = vmatpush1.msra.mxu0 0.0
    %214 = vmatprep.subr.mxu0 0.0
    %215 = vmatpush1.msra.mxu0 0.0
    %216 = vmatprep.subr.mxu0 0.0
    %217 = vmatpush1.msra.mxu0 0.0
    %218 = vmatprep.subr.mxu0 0.0
    %219 = vmatpush1.msra.mxu0 0.0
    %220 = vmatprep.subr.mxu0 0.0
    %221 = vmatpush1.msra.mxu0 0.0
    %222 = vmatprep.subr.mxu0 0.0
    %223 = vmatpush1.msra.mxu0 0.0
    %224 = vmatprep.subr.mxu0 0.0
    %225 = vmatpush1.msra.mxu0 0.0
    %226 = vmatprep.subr.mxu0 0.0
    %227 = vmatpush1.msra.mxu0 0.0
    %228 = vmatprep.subr.mxu0 0.0
    %229 = vmatpush1.msra.mxu0 0.0
    %230 = vmatprep.subr.mxu0 0.0
    %231 = vmatpush1.msra.mxu0 0.0
    %232 = vmatprep.subr.mxu0 0.0
    %233 = vmatpush1.msra.mxu0 0.0
    %234 = vmatprep.subr.mxu0 0.0
    %235 = vmatpush1.msra.mxu0 0.0
    %236 = vmatprep.subr.mxu0 0.0
    %237 = vmatpush1.msra.mxu0 0.0
    %238 = vmatprep.subr.mxu0 0.0
    %239 = vmatpush1.msra.mxu0 0.0
    %240 = vmatprep.subr.mxu0 0.0
    %241 = vmatpush1.msra.mxu0 0.0
    %242 = vmatprep.subr.mxu0 0.0
    %243 = vmatpush1.msra.mxu0 0.0
    %244 = vmatprep.subr.mxu0 0.0
    %245 = vmatpush1.msra.mxu0 0.0
    %246 = vmatprep.subr.mxu0 0.0
    %247 = vmatpush1.msra.mxu0 0.0
    %248 = vmatprep.subr.mxu0 0.0
    %249 = vmatpush1.msra.mxu0 0.0
    %250 = vmatprep.subr.mxu0 0.0
    %251 = vmatpush1.msra.mxu0 0.0
    %252 = vmatprep.subr.mxu0 0.0
    %253 = vmatpush1.msra.mxu0 0.0
    %254 = vmatprep.subr.mxu0 0.0
    %255 = vmatpush1.msra.mxu0 0.0
    %256 = vmatprep.subr.mxu0 0.0
    %257 = vmatpush1.msra.mxu0 0.0
    %258 = vmatprep.subr.mxu0 0.0
    %259 = vmatpush1.msra.mxu0 0.0
    %260 = vmatprep.subr.mxu0 0.0
    %261 = vmatpush1.msra.mxu0 0.0
    %262 = vmatprep.mubr.f32.mxu0 0.0
    %263 = vmatmul.mubr.f32.gmra.mrb[0].mxu0 %v196
    %v264 = vpop.f32.mrb[0].mxu0
    %v265 = vadd.f32 0.0, %v264
    %v266 = vpop.f32.mrb[0].mxu0
    %267 = vdwg.mxu0
    %v268 = vadd.f32 %v113, %v265
    %v269 = vtanh.pop %v268
    %v270 = vrot.slane %v194, 7
    %vm272 = vcmask 1040384
    %v273 = vsel %vm272, 0.0, %v270
    %v274 = vsel %vm272, %v270, 0.0
    %vm277 = vcmask 1046528
    %v278 = vrot.slane %v273, 1
    %v279 = vrot.slane %v274, 1
    %v280 = vsel %vm277, %v278, %v279
    %281 = vrot.lane.b32.xlu0 %v280, 32
    %v282 = vpop.permute.xlu0 %281
    %vm284 = vcmask 1045504
    %v285 = vrot.slane %v273, 2
    %v286 = vrot.slane %v274, 2
    %v287 = vsel %vm284, %v285, %v286
    %288 = vrot.lane.b32.xlu0 %v287, 64
    %v289 = vpop.permute.xlu0 %288
    %v291 = vsel %vm34, %v273, %v282
    %vm292 = vcmask 523264
    %v293 = vsel %vm292, %v291, %v289
    %v295 = vrot.slane %v269, 7
    %v297 = vsel %vm272, 0.0, %v295
    %v298 = vsel %vm272, %v295, 0.0
    %v301 = vrot.slane %v297, 1
    %v302 = vrot.slane %v298, 1
    %v303 = vsel %vm277, %v301, %v302
    %304 = vrot.lane.b32.xlu0 %v303, 32
    %v305 = vpop.permute.xlu0 %304
    %v307 = vrot.slane %v297, 2
    %v308 = vrot.slane %v298, 2
    %v309 = vsel %vm284, %v307, %v308
    %310 = vrot.lane.b32.xlu0 %v309, 64
    %v311 = vpop.permute.xlu0 %310
    %v313 = vsel %vm34, %v297, %v305
    %v314 = vsel %vm292, %v313, %v311
    %v315 = vld [vmem:[%s4] sm:$0xff]
    %v316 = vld [vmem:[%s4 + $0x8] sm:$0xff]
    %v317 = vld [vmem:[%s4 + $0x10] sm:$0xff]
    %v318 = vld [vmem:[%s4 + $0x18] sm:$0xff]
    %v319 = vld [vmem:[%s4 + $0x20] sm:$0xff]
    %v320 = vld [vmem:[%s4 + $0x28] sm:$0xff]
    %v321 = vld [vmem:[%s4 + $0x30] sm:$0xff]
    %v322 = vld [vmem:[%s4 + $0x38] sm:$0xff]
    %v323 = vld [vmem:[%s4 + $0x40] sm:$0xff]
    %v324 = vld [vmem:[%s4 + $0x48] sm:$0xff]
    %v325 = vld [vmem:[%s4 + $0x50] sm:$0xff]
    %v326 = vld [vmem:[%s4 + $0x58] sm:$0xff]
    %vm327 = vcmask 785408
    %v329 = vsel %vm327, %v293, 0
    %v332 = vsel %vm327, %v314, 0
    %334 = vmatprep.subr.mxu0 0.0
    %335 = vmatpush1.msra.mxu0 %v315
    %336 = vmatprep.subr.mxu0 0.0
    %337 = vmatpush1.msra.mxu0 %v316
    %338 = vmatprep.subr.mxu0 0.0
    %339 = vmatpush1.msra.mxu0 %v317
    %340 = vmatprep.subr.mxu0 0.0
    %341 = vmatpush1.msra.mxu0 %v318
    %342 = vmatprep.subr.mxu0 0.0
    %343 = vmatpush1.msra.mxu0 %v319
    %344 = vmatprep.subr.mxu0 0.0
    %345 = vmatpush1.msra.mxu0 %v320
    %346 = vmatprep.subr.mxu0 0.0
    %347 = vmatpush1.msra.mxu0 %v321
    %348 = vmatprep.subr.mxu0 0.0
    %349 = vmatpush1.msra.mxu0 %v322
    %350 = vmatprep.subr.mxu0 0.0
    %351 = vmatpush1.msra.mxu0 %v323
    %352 = vmatprep.subr.mxu0 0.0
    %353 = vmatpush1.msra.mxu0 %v324
    %354 = vmatprep.subr.mxu0 0.0
    %355 = vmatpush1.msra.mxu0 %v325
    %356 = vmatprep.subr.mxu0 0.0
    %357 = vmatpush1.msra.mxu0 %v326
    %358 = vmatprep.subr.mxu0 0.0
    %359 = vmatpush1.msra.mxu0 0.0
    %360 = vmatprep.subr.mxu0 0.0
    %361 = vmatpush1.msra.mxu0 0.0
    %362 = vmatprep.subr.mxu0 0.0
    %363 = vmatpush1.msra.mxu0 0.0
    %364 = vmatprep.subr.mxu0 0.0
    %365 = vmatpush1.msra.mxu0 0.0
    %366 = vmatprep.subr.mxu0 0.0
    %367 = vmatpush1.msra.mxu0 0.0
    %368 = vmatprep.subr.mxu0 0.0
    %369 = vmatpush1.msra.mxu0 0.0
    %370 = vmatprep.subr.mxu0 0.0
    %371 = vmatpush1.msra.mxu0 0.0
    %372 = vmatprep.subr.mxu0 0.0
    %373 = vmatpush1.msra.mxu0 0.0
    %374 = vmatprep.subr.mxu0 0.0
    %375 = vmatpush1.msra.mxu0 0.0
    %376 = vmatprep.subr.mxu0 0.0
    %377 = vmatpush1.msra.mxu0 0.0
    %378 = vmatprep.subr.mxu0 0.0
    %379 = vmatpush1.msra.mxu0 0.0
    %380 = vmatprep.subr.mxu0 0.0
    %381 = vmatpush1.msra.mxu0 0.0
    %382 = vmatprep.subr.mxu0 0.0
    %383 = vmatpush1.msra.mxu0 0.0
    %384 = vmatprep.subr.mxu0 0.0
    %385 = vmatpush1.msra.mxu0 0.0
    %386 = vmatprep.subr.mxu0 0.0
    %387 = vmatpush1.msra.mxu0 0.0
    %388 = vmatprep.subr.mxu0 0.0
    %389 = vmatpush1.msra.mxu0 0.0
    %390 = vmatprep.subr.mxu0 0.0
    %391 = vmatpush1.msra.mxu0 0.0
    %392 = vmatprep.subr.mxu0 0.0
    %393 = vmatpush1.msra.mxu0 0.0
    %394 = vmatprep.subr.mxu0 0.0
    %395 = vmatpush1.msra.mxu0 0.0
    %396 = vmatprep.subr.mxu0 0.0
    %397 = vmatpush1.msra.mxu0 0.0
    %398 = vmatprep.mubr.f32.mxu0 0.0
    %399 = vmatmul.mubr.f32.gmra.mrb[0].mxu0 %v329
    %v400 = vpop.f32.mrb[0].mxu0
    %v401 = vadd.f32 0.0, %v400
    %v402 = vpop.f32.mrb[0].mxu0
    %403 = vmatprep.mubr.f32.mxu0 0.0
    %404 = vmatmul.mubr.f32.gmra.mrb[0].mxu0 %v332
    %v405 = vpop.f32.mrb[0].mxu0
    %v406 = vadd.f32 0.0, %v405
    %v407 = vpop.f32.mrb[0].mxu0
    %408 = vdwg.mxu0
    %v409 = vxor.u32 %v401, 2147483648
    %v410 = vxor.u32 %v406, 2147483648
    %v411 = vmul.f32 %v409, 1.442695
    %v412 = vpow.pop %v411
    %v413 = vmul.f32 %v410, 1.442695
    %v414 = vpow.pop %v413
    %v415 = vadd.f32 %v412, 1.0
    %v416 = vadd.f32 %v414, 1.0
    %v417 = vrcp.pop %v415
    %v418 = vmul.f32 1.0, %v417
    %v419 = vrcp.pop %v416
    %v420 = vmul.f32 1.0, %v419
    %423 = vrot.lane.b32.xlu0 %v418, 96
    %v424 = vpop.permute.xlu0 %423
    %425 = vrot.lane.b32.xlu0 %v420, 96
    %v426 = vpop.permute.xlu0 %425
    %v429 = vmul.f32 %v401, %v424
    %v430 = vmul.f32 %v406, %v426
    %431 = vst.msk [vmem:[#allocation2] sm:$0xff] %vm34, %v429
    %432 = vst.msk [vmem:[#allocation2 + $0x8] sm:$0xff] %vm34, %v430
    // Predicated region
    $region22: #{tpu_custom_call.1} parent=1 // pred_check
      _
    $region23: #{tpu_custom_call.1} parent=1 // pred_check_branch
      %434 = sbr.rel (0) target = $region25
    $region24: #{tpu_custom_call.1} parent=1 // pred_region
      %s436 = ssub.s32 256, 256
      %437 = vsyncadd [#allocation3], %s436
      %s438 = sshll.u32 [#allocation2], 4
      %s439 = int_to_ptr.vmem [resolvable:$true] %s438
      %444 = dma.vmem_to_hbm [thread:$0]  %s439, 256, %s5, [#allocation3], 128, 128, 8
    $region25: #{tpu_custom_call.1} parent=1 // pred_fallthru
      _
    // Predicated region
    $region26: #{tpu_custom_call.1} parent=1 // pred_check
      _
    $region27: #{tpu_custom_call.1} parent=1 // pred_check_branch
      %446 = sbr.rel (0) target = $region29
    $region28: #{tpu_custom_call.1} parent=1 // pred_region
      %447 = dma.done [#allocation3], 256
    $region29: #{tpu_custom_call.1} parent=1 // pred_fallthru
      _
    %448 = vsyncpa [#allocation3], 1

</llo_original>
